<compile_context>
chip_gen: v7x
topology: tpu7x:2x2x1
jax: 0.10.0
libtpu: 0.0.40
codegen_flags: <defaults>
</compile_context>

<pallas_src>
import jax
import jax.numpy as jnp
from jax.experimental import pallas as pl
from jax.experimental.pallas import tpu as pltpu


def _round_up(n, m):
    return ((n + m - 1) // m) * m


def _vmem_budget_bytes():
    """~3/4 of physical VMEM: v5e/v6e 128 MiB -> 96 MiB, v7x 64 MiB -> 48 MiB.

    Falls back to the v7x-safe budget if the hardware query is unavailable.
    """
    phys = 64 * 1024 * 1024
    try:
        phys = int(getattr(pltpu.get_tpu_info(), "vmem_capacity_bytes", phys))
    except Exception:
        pass
    return max(32 * 1024 * 1024, (phys * 3) // 4)


def _mlp_kernel(x_ref, w1_ref, b1_ref, w2_ref, b2_ref, w3_ref, b3_ref, o_ref):
    """One batch tile: x (TB, IN) -> out (TB, 1).

    Matmul operands are in the compute dtype (bf16 by default); accumulation,
    biases and ReLUs are f32.  All three layers run on the MXU (it has large
    slack under the HBM-bound critical path of streaming x).
    """
    x = x_ref[...]

    # fc1 + ReLU
    h1 = jnp.dot(x, w1_ref[...], preferred_element_type=jnp.float32)
    h1 = jnp.maximum(h1 + b1_ref[...], 0.0)

    # fc2 + ReLU
    h2 = jnp.dot(h1.astype(w2_ref.dtype), w2_ref[...],
                 preferred_element_type=jnp.float32)
    h2 = jnp.maximum(h2 + b2_ref[...], 0.0)

    # fc3 (MXU, N=1) + scalar bias from SMEM, f32 epilogue.
    out = jnp.dot(h2.astype(w3_ref.dtype), w3_ref[...],
                  preferred_element_type=jnp.float32)
    o_ref[...] = (out + b3_ref[0, 0]).astype(o_ref.dtype)


def chess_evaluator_forward(x, params, *, compute_dtype=jnp.bfloat16,
                            block_b=None, vmem_budget_bytes=None):
    """x: (B, input_size) float32.  params: pre-transposed weights/biases.

    compute_dtype: dtype of the matmul operands (bf16 default for ~2x HBM
    traffic reduction; jnp.float32 for exact parity with the PyTorch module).
    """
    B, in_features = x.shape
    cdt = jnp.dtype(compute_dtype)
    itemsize = cdt.itemsize

    # Matmul operands in the compute dtype; biases stay f32 (f32 epilogues).
    x_c = x.astype(cdt)
    w1 = params["w1"].astype(cdt)
    w2 = params["w2"].astype(cdt)
    w3 = params["w3"].astype(cdt)
    b1 = params["b1"].astype(jnp.float32)
    b2 = params["b2"].astype(jnp.float32)
    b3 = params["b3"].astype(jnp.float32)

    if vmem_budget_bytes is None:
        vmem_budget_bytes = _vmem_budget_bytes()

    # ---- batch-tile selection (the main lever for this HBM-bound kernel) ----
    # Per-row VMEM (conservative): double-buffered x tile, double-buffered
    # (lane-padded) output tile, and lane-padded f32 intermediates h1/h2/out.
    weight_bytes = (in_features * 64 + 64 * 32 + 32) * itemsize + (64 + 32 + 1) * 4
    row_bytes = 2 * in_features * itemsize + 2 * 512 + 3 * 512
    slack = 4 * 1024 * 1024  # compiler scratch / pipeline bookkeeping headroom
    tb_budget = max(128, (vmem_budget_bytes - weight_bytes - slack) // row_bytes)

    if block_b is None:
        # Target ~2 MiB of x per grid step: far past the per-step overhead
        # knee, still tiny relative to the VMEM budget.
        block_b = max(128, (2 * 1024 * 1024) // (in_features * itemsize))

    tb = min(int(block_b), int(tb_budget), _round_up(B, 128))
    if B > 128:
        # Keep >= 2 tiles so dimension_semantics=("parallel",) splits the
        # batch across both TensorCores on v7x (no effect on v5e/v6e).
        tb = min(tb, max(128, _round_up(B, 256) // 2))
    tb = max(128, (tb // 128) * 128)  # lane/sublane-aligned batch tile

    b_pad = _round_up(B, tb)
    if b_pad != B:
        x_c = jnp.pad(x_c, ((0, b_pad - B), (0, 0)))
    num_tiles = b_pad // tb

    # Raise the scoped-VMEM limit only as far as needed (capped at the
    # per-generation budget); small problems keep the safe 32 MiB default.
    vmem_needed = weight_bytes + tb * row_bytes + slack
    vmem_limit = int(min(vmem_budget_bytes, max(32 * 1024 * 1024, vmem_needed)))

    flops = 2 * b_pad * (in_features * 64 + 64 * 32 + 32)
    bytes_accessed = (
        b_pad * in_features * itemsize                     # x (streamed)
        + (in_features * 64 + 64 * 32 + 32) * itemsize     # weights (once)
        + (64 + 32 + 1) * 4                                # biases (once)
        + b_pad * 4                                        # output
    )

    out = pl.pallas_call(
        _mlp_kernel,
        out_shape=jax.ShapeDtypeStruct((b_pad, 1), jnp.float32),
        grid=(num_tiles,),
        in_specs=[
            # x: streamed over the batch grid -> auto double-buffered DMA.
            pl.BlockSpec((tb, in_features), lambda i: (i, 0)),
            # Weights/biases: constant block index -> fetched once, VMEM-resident.
            pl.BlockSpec((in_features, 64), lambda i: (0, 0)),
            pl.BlockSpec((1, 64), lambda i: (0, 0)),
            pl.BlockSpec((64, 32), lambda i: (0, 0)),
            pl.BlockSpec((1, 32), lambda i: (0, 0)),
            pl.BlockSpec((32, 1), lambda i: (0, 0)),
            # b3 scalar via SMEM.
            pl.BlockSpec(memory_space=pltpu.MemorySpace.SMEM),
        ],
        out_specs=pl.BlockSpec((tb, 1), lambda i: (i, 0)),
        compiler_params=pltpu.CompilerParams(
            dimension_semantics=("parallel",),
            vmem_limit_bytes=vmem_limit,
        ),
        cost_estimate=pl.CostEstimate(
            flops=flops, transcendentals=0, bytes_accessed=int(bytes_accessed)
        ),
    )(x_c, w1, b1, w2, b2, w3, b3)

    return out[:B]


def init_params(input_size, key):
    """Deterministic synthetic parameters matching the PyTorch module shapes.

    PyTorch nn.Linear stores weight as (out, in); here we keep the transposed
    (in, out) layout so the kernel computes x @ W + b directly.
    """
    k1, k2, k3, k4, k5, k6 = jax.random.split(key, 6)
    scale1 = 1.0 / jnp.sqrt(input_size)
    scale2 = 1.0 / jnp.sqrt(64.0)
    scale3 = 1.0 / jnp.sqrt(32.0)
    return {
        "w1": jax.random.uniform(k1, (input_size, 64), jnp.float32, -1.0, 1.0) * scale1,
        "b1": jax.random.uniform(k2, (1, 64), jnp.float32, -1.0, 1.0) * scale1,
        "w2": jax.random.uniform(k3, (64, 32), jnp.float32, -1.0, 1.0) * scale2,
        "b2": jax.random.uniform(k4, (1, 32), jnp.float32, -1.0, 1.0) * scale2,
        "w3": jax.random.uniform(k5, (32, 1), jnp.float32, -1.0, 1.0) * scale3,
        "b3": jax.random.uniform(k6, (1, 1), jnp.float32, -1.0, 1.0) * scale3,
    }


def reference_forward(x, params, compute_dtype=jnp.float32):
    """Plain-JAX reference with the same cast points as the kernel."""
    cdt = jnp.dtype(compute_dtype)
    hp = jax.lax.Precision.HIGHEST
    f32 = jnp.float32
    h1 = jnp.dot(x.astype(cdt), params["w1"].astype(cdt),
                 precision=hp, preferred_element_type=f32) + params["b1"]
    h1 = jnp.maximum(h1, 0.0)
    h2 = jnp.dot(h1.astype(cdt), params["w2"].astype(cdt),
                 precision=hp, preferred_element_type=f32) + params["b2"]
    h2 = jnp.maximum(h2, 0.0)
    return jnp.dot(h2.astype(cdt), params["w3"].astype(cdt),
                   precision=hp, preferred_element_type=f32) + params["b3"]


if __name__ == "__main__":
    key = jax.random.PRNGKey(0)
    k_x, k_p = jax.random.split(key)

    # Small synthetic problem: 200 boards x 128 flattened features.  batch=200
    # pads to 256 and splits into two 128-row tiles, exercising the multi-tile
    # pipelined path (and the dual-TensorCore split on v7x).
    batch = 200
    input_size = 128

    x = jax.random.normal(k_x, (batch, input_size), dtype=jnp.float32)
    params = init_params(input_size, k_p)

    # Perf mode (default): bf16 matmul operands, f32 accumulation/epilogues.
    out_bf16 = jax.block_until_ready(chess_evaluator_forward(x, params))
    assert out_bf16.shape == (batch, 1)
    ref_bf16 = reference_forward(x, params, compute_dtype=jnp.bfloat16)
    assert jnp.allclose(out_bf16, ref_bf16, atol=2e-3, rtol=2e-2), float(
        jnp.max(jnp.abs(out_bf16 - ref_bf16)))

    # Parity mode: pure f32 path, matching the PyTorch module's numerics.
    out_f32 = jax.block_until_ready(
        chess_evaluator_forward(x, params, compute_dtype=jnp.float32))
    ref_f32 = reference_forward(x, params, compute_dtype=jnp.float32)
    assert jnp.allclose(out_f32, ref_f32, atol=2e-3, rtol=2e-2), float(
        jnp.max(jnp.abs(out_f32 - ref_f32)))

    print("KERNEL_OK")
</pallas_src>

<mosaic_0001>
module attributes {stable_mosaic.version = 11 : i64} {
  func.func @_mlp_kernel(%arg0: i32, %arg1: memref<128x128xbf16, #tpu.memory_space<vmem>>, %arg2: memref<128x64xbf16, #tpu.memory_space<vmem>>, %arg3: memref<1x64xf32, #tpu.memory_space<vmem>>, %arg4: memref<64x32xbf16, #tpu.memory_space<vmem>>, %arg5: memref<1x32xf32, #tpu.memory_space<vmem>>, %arg6: memref<32x1xbf16, #tpu.memory_space<vmem>>, %arg7: memref<1x1xf32, #tpu.memory_space<smem>>, %arg8: memref<128x1xf32, #tpu.memory_space<vmem>>) attributes {dimension_semantics = [#tpu.dimension_semantics<parallel>], iteration_bounds = array<i64: 2>, scalar_prefetch = 0 : i64, scratch_operands = 0 : i64, tpu.core_type = #tpu.core_type<tc>, window_params = [{transform_indices = @transform_0, window_bounds = array<i64: 128, 128>}, {pipeline_mode = #tpu.pipeline_mode<synchronous>, transform_indices = @transform_1, window_bounds = array<i64: 128, 64>}, {pipeline_mode = #tpu.pipeline_mode<synchronous>, transform_indices = @transform_2, window_bounds = array<i64: 1, 64>}, {pipeline_mode = #tpu.pipeline_mode<synchronous>, transform_indices = @transform_3, window_bounds = array<i64: 64, 32>}, {pipeline_mode = #tpu.pipeline_mode<synchronous>, transform_indices = @transform_4, window_bounds = array<i64: 1, 32>}, {pipeline_mode = #tpu.pipeline_mode<synchronous>, transform_indices = @transform_5, window_bounds = array<i64: 32, 1>}, {transform_indices = @transform_6, window_bounds = array<i64: 1, 1>}, {transform_indices = @transform_7, window_bounds = array<i64: 128, 1>}]} {
    %c0 = arith.constant 0 : index
    %c0_0 = arith.constant 0 : index
    %0 = vector.load %arg1[%c0, %c0_0] : memref<128x128xbf16, #tpu.memory_space<vmem>>, vector<128x128xbf16>
    %c0_1 = arith.constant 0 : index
    %c0_2 = arith.constant 0 : index
    %1 = vector.load %arg2[%c0_1, %c0_2] : memref<128x64xbf16, #tpu.memory_space<vmem>>, vector<128x64xbf16>
    %cst = arith.constant dense<0.000000e+00> : vector<128x64xf32>
    %2 = tpu.matmul %0, %1, %cst {dimension_numbers = #tpu.dot_dimension_numbers<[1], [0], [0], [1], [0, 0, 1, 1], [], []>} : vector<128x128xbf16>, vector<128x64xbf16>, vector<128x64xf32> -> vector<128x64xf32>
    %c0_3 = arith.constant 0 : index
    %c0_4 = arith.constant 0 : index
    %3 = vector.load %arg3[%c0_3, %c0_4] : memref<1x64xf32, #tpu.memory_space<vmem>>, vector<1x64xf32>
    %4 = vector.broadcast %3 : vector<1x64xf32> to vector<128x64xf32>
    %5 = arith.addf %2, %4 : vector<128x64xf32>
    %cst_5 = arith.constant 0.000000e+00 : f32
    %6 = vector.broadcast %cst_5 : f32 to vector<128x64xf32>
    %7 = arith.maximumf %5, %6 : vector<128x64xf32>
    %8 = arith.truncf %7 : vector<128x64xf32> to vector<128x64xbf16>
    %c0_6 = arith.constant 0 : index
    %c0_7 = arith.constant 0 : index
    %9 = vector.load %arg4[%c0_6, %c0_7] : memref<64x32xbf16, #tpu.memory_space<vmem>>, vector<64x32xbf16>
    %cst_8 = arith.constant dense<0.000000e+00> : vector<128x32xf32>
    %10 = tpu.matmul %8, %9, %cst_8 {dimension_numbers = #tpu.dot_dimension_numbers<[1], [0], [0], [1], [0, 0, 1, 1], [], []>} : vector<128x64xbf16>, vector<64x32xbf16>, vector<128x32xf32> -> vector<128x32xf32>
    %c0_9 = arith.constant 0 : index
    %c0_10 = arith.constant 0 : index
    %11 = vector.load %arg5[%c0_9, %c0_10] : memref<1x32xf32, #tpu.memory_space<vmem>>, vector<1x32xf32>
    %12 = vector.broadcast %11 : vector<1x32xf32> to vector<128x32xf32>
    %13 = arith.addf %10, %12 : vector<128x32xf32>
    %cst_11 = arith.constant 0.000000e+00 : f32
    %14 = vector.broadcast %cst_11 : f32 to vector<128x32xf32>
    %15 = arith.maximumf %13, %14 : vector<128x32xf32>
    %16 = arith.truncf %15 : vector<128x32xf32> to vector<128x32xbf16>
    %c0_12 = arith.constant 0 : index
    %c0_13 = arith.constant 0 : index
    %17 = vector.load %arg6[%c0_12, %c0_13] : memref<32x1xbf16, #tpu.memory_space<vmem>>, vector<32x1xbf16>
    %cst_14 = arith.constant dense<0.000000e+00> : vector<128x1xf32>
    %18 = tpu.matmul %16, %17, %cst_14 {dimension_numbers = #tpu.dot_dimension_numbers<[1], [0], [0], [1], [0, 0, 1, 1], [], []>} : vector<128x32xbf16>, vector<32x1xbf16>, vector<128x1xf32> -> vector<128x1xf32>
    %c0_15 = arith.constant 0 : index
    %c0_16 = arith.constant 0 : index
    %19 = memref.load %arg7[%c0_15, %c0_16] : memref<1x1xf32, #tpu.memory_space<smem>>
    %20 = vector.broadcast %19 : f32 to vector<128x1xf32>
    %21 = arith.addf %18, %20 : vector<128x1xf32>
    %c0_17 = arith.constant 0 : index
    %c0_18 = arith.constant 0 : index
    %22 = vector.load %arg8[%c0_17, %c0_18] : memref<128x1xf32, #tpu.memory_space<vmem>>, vector<128x1xf32>
    tpu.vector_store %arg8[%c0_17, %c0_18], %21 {strides = array<i32>} : memref<128x1xf32, #tpu.memory_space<vmem>>, vector<128x1xf32>,
    return
  }
  func.func @transform_0(%arg0: i32) -> (i32, i32) {
    %c0_i32 = arith.constant 0 : i32
    %c0_i32_0 = arith.constant 0 : i32
    return %arg0, %c0_i32 : i32, i32
  }
  func.func @transform_1(%arg0: i32) -> (i32, i32) {
    %c0_i32 = arith.constant 0 : i32
    %c0_i32_0 = arith.constant 0 : i32
    %c0_i32_1 = arith.constant 0 : i32
    return %c0_i32, %c0_i32_0 : i32, i32
  }
  func.func @transform_2(%arg0: i32) -> (i32, i32) {
    %c0_i32 = arith.constant 0 : i32
    %c0_i32_0 = arith.constant 0 : i32
    %c0_i32_1 = arith.constant 0 : i32
    return %c0_i32, %c0_i32_0 : i32, i32
  }
  func.func @transform_3(%arg0: i32) -> (i32, i32) {
    %c0_i32 = arith.constant 0 : i32
    %c0_i32_0 = arith.constant 0 : i32
    %c0_i32_1 = arith.constant 0 : i32
    return %c0_i32, %c0_i32_0 : i32, i32
  }
  func.func @transform_4(%arg0: i32) -> (i32, i32) {
    %c0_i32 = arith.constant 0 : i32
    %c0_i32_0 = arith.constant 0 : i32
    %c0_i32_1 = arith.constant 0 : i32
    return %c0_i32, %c0_i32_0 : i32, i32
  }
  func.func @transform_5(%arg0: i32) -> (i32, i32) {
    %c0_i32 = arith.constant 0 : i32
    %c0_i32_0 = arith.constant 0 : i32
    %c0_i32_1 = arith.constant 0 : i32
    return %c0_i32, %c0_i32_0 : i32, i32
  }
  func.func @transform_6(%arg0: i32) -> (i32, i32) {
    %c0_i32 = arith.constant 0 : i32
    %c0_i32_0 = arith.constant 0 : i32
    %c0_i32_1 = arith.constant 0 : i32
    return %c0_i32, %c0_i32_0 : i32, i32
  }
  func.func @transform_7(%arg0: i32) -> (i32, i32) {
    %c0_i32 = arith.constant 0 : i32
    %c0_i32_0 = arith.constant 0 : i32
    return %arg0, %c0_i32 : i32, i32
  }
}

</mosaic_0001>

<llo_original>
// kernel: tpu_custom_call.1
$region0: #{tpu_custom_call.1}
  #allocation0 [shape = 'u32[]', space=smem, size = 0x4, offset = 0x4, fixed_abs, tag = 'smem constant byte address 0x4 - core index']
  #allocation1 [shape = 'u32[144,128]{1,0:T(1,128)}', space=vmem, size = 0x12000, scoped, tag = 'internal scratch']
  #allocation2 [shape = 'f32[1,1]{1,0:T(1,128)S(6)}', space=smem, size = 0x200, scoped, tag = 'scoped memory for tpu_custom_call.1']
  %s0 = inlined_call_operand.vmem [shape: bf16[256,128], index: 0, kind: input, shape index: {}]
  %s1 = inlined_call_operand.vmem [shape: bf16[128,64], index: 1, kind: input, shape index: {}]
  %s2 = inlined_call_operand.hbm [shape: f32[1,64], index: 2, kind: input, shape index: {}]
  %s3 = inlined_call_operand.vmem [shape: bf16[64,32], index: 3, kind: input, shape index: {}]
  %s4 = inlined_call_operand.vmem [shape: f32[1,32], index: 4, kind: input, shape index: {}]
  %s5 = inlined_call_operand.vmem [shape: bf16[32,1], index: 5, kind: input, shape index: {}]
  %s6 = inlined_call_operand.<no memory space> [shape: f32[1,1], index: 6, kind: input, shape index: {}]
  %s7 = inlined_call_operand.vmem [shape: f32[256,1], index: 7, kind: output, shape index: {}]
  %s8 = sld [smem:[#allocation0]]
  $region65: #{tpu_custom_call.1} parent=0
    _
  %s10 = ssub.s32 1, %s8
  %s11 = scalar_select 0, %s10, %s8
  %12 = sst [smem:[#allocation2]] %s6
  $region1: #{tpu_custom_call.1} parent=0
    #allocation3 [shape = 'u8[512]{0}', space=vmem, size = 0x400, scoped, tag = 'input window, operand 2, single buffered']
    #allocation4 [shape = 's32[2]{0}', space=sflag, size = 0x8, scoped, tag = 'scoped memory for tpu_custom_call.1']
    %13 = vsyncpa [#allocation4], 0
    loop: start=0, step=1, limit=4
    $region2: #{tpu_custom_call.1} parent=1 // loop_pre_header
      _
    $region3: #{tpu_custom_call.1} parent=1 // loop_header
      %s15 = sphi 0, %s19
      %p16 = scmp.ge.s32.totalorder %s15, 4
      %s25 = sphi 0, %s27
      %s28 = sphi 0, %s25
      %s29 = sphi 0, %s28
      %s45 = sphi 0, %s29
      %s49 = sphi 0, %s49
      %s51 = sphi 0, %s49
      %s52 = sphi 0, %s51
      %s66 = sphi 0, %s52
      %s70 = sphi 0, %s70
      %s72 = sphi 0, %s70
      %s73 = sphi 0, %s72
      %s87 = sphi 0, %s73
      %s91 = sphi 0, %s91
      %s93 = sphi 0, %s91
      %s94 = sphi 0, %s93
      %s108 = sphi 0, %s94
      %s112 = sphi 0, %s112
      %s114 = sphi 0, %s112
      %s115 = sphi 0, %s114
      %s129 = sphi 0, %s115
      %s133 = sphi 0, %s133
      %s135 = sphi 0, %s133
      %s136 = sphi 0, %s135
      %s150 = sphi 0, %s136
      %s154 = sphi 0, %s154
      %s156 = sphi 0, %s154
      %s157 = sphi 0, %s156
      %s171 = sphi 0, %s157
      %s177 = sphi 0, %s179
      %s180 = sphi 0, %s177
      %s181 = sphi 0, %s180
      %s197 = sphi 0, %s181
    $region4: #{tpu_custom_call.1} parent=1 // loop_header_branch
      %18 = sbr.rel (%p16) target = $region8
    $region5: #{tpu_custom_call.1} parent=1 // loop_body
      %s20 = ssub.s32 %s15, 1
      %s21 = ssub.s32 %s15, 2
      %s22 = sadd.s32 %s15, 1
      %s23 = ssub.s32 %s15, %s22
      %p24 = scmp.eq.s32.totalorder %s23, 0
      %s26 = sadd.s32 %s25, 1
      %s27 = scalar_select %p24, %s25, %s26
      %p30 = pneg %p24
      %p31 = scmp.eq.s32.totalorder %s15, 1
      %p32 = por %p30, %p31
      %p33 = scmp.ne.s32.totalorder %s25, %s28
      %p34 = scmp.eq.s32.totalorder %s15, 0
      %p35 = por %p33, %p34
      %p36 = scmp.ne.s32.totalorder %s25, %s28
      %p37 = scmp.eq.s32.totalorder %s20, 1
      %p38 = por %p36, %p37
      %p39 = scmp.ne.s32.totalorder %s28, %s29
      %p40 = scmp.eq.s32.totalorder %s20, 0
      %p41 = por %p39, %p40
      %p42 = scmp.ne.s32.totalorder %s28, %s29
      %p43 = scmp.eq.s32.totalorder %s21, 1
      %p44 = por %p42, %p43
      %p46 = scmp.ne.s32.totalorder %s29, %s45
      %p47 = scmp.eq.s32.totalorder %s21, 0
      %p48 = por %p46, %p47
      %s50 = sadd.s32 %s49, 1
      %p53 = scmp.eq.s32.totalorder %s15, 1
      %p54 = scmp.ne.s32.totalorder %s49, %s51
      %p55 = scmp.eq.s32.totalorder %s15, 0
      %p56 = por %p54, %p55
      %p57 = scmp.ne.s32.totalorder %s49, %s51
      %p58 = scmp.eq.s32.totalorder %s20, 1
      %p59 = por %p57, %p58
      %p60 = scmp.ne.s32.totalorder %s51, %s52
      %p61 = scmp.eq.s32.totalorder %s20, 0
      %p62 = por %p60, %p61
      %p63 = scmp.ne.s32.totalorder %s51, %s52
      %p64 = scmp.eq.s32.totalorder %s21, 1
      %p65 = por %p63, %p64
      %p67 = scmp.ne.s32.totalorder %s52, %s66
      %p68 = scmp.eq.s32.totalorder %s21, 0
      %p69 = por %p67, %p68
      %s71 = sadd.s32 %s70, 1
      %p74 = scmp.eq.s32.totalorder %s15, 1
      %p75 = scmp.ne.s32.totalorder %s70, %s72
      %p76 = scmp.eq.s32.totalorder %s15, 0
      %p77 = por %p75, %p76
      %p78 = scmp.ne.s32.totalorder %s70, %s72
      %p79 = scmp.eq.s32.totalorder %s20, 1
      %p80 = por %p78, %p79
      %p81 = scmp.ne.s32.totalorder %s72, %s73
      %p82 = scmp.eq.s32.totalorder %s20, 0
      %p83 = por %p81, %p82
      %p84 = scmp.ne.s32.totalorder %s72, %s73
      %p85 = scmp.eq.s32.totalorder %s21, 1
      %p86 = por %p84, %p85
      %p88 = scmp.ne.s32.totalorder %s73, %s87
      %p89 = scmp.eq.s32.totalorder %s21, 0
      %p90 = por %p88, %p89
      %s92 = sadd.s32 %s91, 1
      %p95 = scmp.eq.s32.totalorder %s15, 1
      %p96 = scmp.ne.s32.totalorder %s91, %s93
      %p97 = scmp.eq.s32.totalorder %s15, 0
      %p98 = por %p96, %p97
      %p99 = scmp.ne.s32.totalorder %s91, %s93
      %p100 = scmp.eq.s32.totalorder %s20, 1
      %p101 = por %p99, %p100
      %p102 = scmp.ne.s32.totalorder %s93, %s94
      %p103 = scmp.eq.s32.totalorder %s20, 0
      %p104 = por %p102, %p103
      %p105 = scmp.ne.s32.totalorder %s93, %s94
      %p106 = scmp.eq.s32.totalorder %s21, 1
      %p107 = por %p105, %p106
      %p109 = scmp.ne.s32.totalorder %s94, %s108
      %p110 = scmp.eq.s32.totalorder %s21, 0
      %p111 = por %p109, %p110
      %s113 = sadd.s32 %s112, 1
      %p116 = scmp.eq.s32.totalorder %s15, 1
      %p117 = scmp.ne.s32.totalorder %s112, %s114
      %p118 = scmp.eq.s32.totalorder %s15, 0
      %p119 = por %p117, %p118
      %p120 = scmp.ne.s32.totalorder %s112, %s114
      %p121 = scmp.eq.s32.totalorder %s20, 1
      %p122 = por %p120, %p121
      %p123 = scmp.ne.s32.totalorder %s114, %s115
      %p124 = scmp.eq.s32.totalorder %s20, 0
      %p125 = por %p123, %p124
      %p126 = scmp.ne.s32.totalorder %s114, %s115
      %p127 = scmp.eq.s32.totalorder %s21, 1
      %p128 = por %p126, %p127
      %p130 = scmp.ne.s32.totalorder %s115, %s129
      %p131 = scmp.eq.s32.totalorder %s21, 0
      %p132 = por %p130, %p131
      %s134 = sadd.s32 %s133, 1
      %p137 = scmp.eq.s32.totalorder %s15, 1
      %p138 = scmp.ne.s32.totalorder %s133, %s135
      %p139 = scmp.eq.s32.totalorder %s15, 0
      %p140 = por %p138, %p139
      %p141 = scmp.ne.s32.totalorder %s133, %s135
      %p142 = scmp.eq.s32.totalorder %s20, 1
      %p143 = por %p141, %p142
      %p144 = scmp.ne.s32.totalorder %s135, %s136
      %p145 = scmp.eq.s32.totalorder %s20, 0
      %p146 = por %p144, %p145
      %p147 = scmp.ne.s32.totalorder %s135, %s136
      %p148 = scmp.eq.s32.totalorder %s21, 1
      %p149 = por %p147, %p148
      %p151 = scmp.ne.s32.totalorder %s136, %s150
      %p152 = scmp.eq.s32.totalorder %s21, 0
      %p153 = por %p151, %p152
      %s155 = sadd.s32 %s154, 1
      %p158 = scmp.eq.s32.totalorder %s15, 1
      %p159 = scmp.ne.s32.totalorder %s154, %s156
      %p160 = scmp.eq.s32.totalorder %s15, 0
      %p161 = por %p159, %p160
      %p162 = scmp.ne.s32.totalorder %s154, %s156
      %p163 = scmp.eq.s32.totalorder %s20, 1
      %p164 = por %p162, %p163
      %p165 = scmp.ne.s32.totalorder %s156, %s157
      %p166 = scmp.eq.s32.totalorder %s20, 0
      %p167 = por %p165, %p166
      %p168 = scmp.ne.s32.totalorder %s156, %s157
      %p169 = scmp.eq.s32.totalorder %s21, 1
      %p170 = por %p168, %p169
      %p172 = scmp.ne.s32.totalorder %s157, %s171
      %p173 = scmp.eq.s32.totalorder %s21, 0
      %p174 = por %p172, %p173
      %s175 = ssub.s32 %s15, %s22
      %p176 = scmp.eq.s32.totalorder %s175, 0
      %s178 = sadd.s32 %s177, 1
      %s179 = scalar_select %p176, %s177, %s178
      %p182 = pneg %p176
      %p183 = scmp.eq.s32.totalorder %s15, 1
      %p184 = por %p182, %p183
      %p185 = scmp.ne.s32.totalorder %s177, %s180
      %p186 = scmp.eq.s32.totalorder %s15, 0
      %p187 = por %p185, %p186
      %p188 = scmp.ne.s32.totalorder %s177, %s180
      %p189 = scmp.eq.s32.totalorder %s20, 1
      %p190 = por %p188, %p189
      %p191 = scmp.ne.s32.totalorder %s180, %s181
      %p192 = scmp.eq.s32.totalorder %s20, 0
      %p193 = por %p191, %p192
      %p194 = scmp.ne.s32.totalorder %s180, %s181
      %p195 = scmp.eq.s32.totalorder %s21, 1
      %p196 = por %p194, %p195
      %p198 = scmp.ne.s32.totalorder %s181, %s197
      %p199 = scmp.eq.s32.totalorder %s21, 0
      %p200 = por %p198, %p199
      %p201 = scmp.le.s32.totalorder 1, %s15
      %p202 = scmp.lt.s32.totalorder %s15, 3
      %p203 = pnand %p201, %p202
      %p204 = pneg %p203
      // Predicated region
      $region9: #{tpu_custom_call.1} parent=5 // pred_check
        _
      $region10: #{tpu_custom_call.1} parent=5 // pred_check_branch
        %206 = sbr.rel (%p203) target = $region12
      $region11: #{tpu_custom_call.1} parent=5 // pred_region
        %s207 = ssub.s32 %s15, 1
        // Predicated region
        $region13: #{tpu_custom_call.1} parent=11 // pred_check
          %p208 = pneg %p62
        $region14: #{tpu_custom_call.1} parent=11 // pred_check_branch
          %210 = sbr.rel (%p208) target = $region16
        $region15: #{tpu_custom_call.1} parent=11 // pred_region
          _
        $region16: #{tpu_custom_call.1} parent=11 // pred_fallthru
          _
        // Predicated region
        $region17: #{tpu_custom_call.1} parent=11 // pred_check
          %p211 = pneg %p83
        $region18: #{tpu_custom_call.1} parent=11 // pred_check_branch
          %213 = sbr.rel (%p211) target = $region20
        $region19: #{tpu_custom_call.1} parent=11 // pred_region
          %s215 = ssub.s32 16, 16
          %216 = vsyncadd [#allocation4], %s215
          %s218 = sshll.u32 [#allocation3], 4
          %s219 = int_to_ptr.vmem [resolvable:$true] %s218
          %221 = dma.hbm_to_vmem [thread:$0]  %s2, 16, %s219, [#allocation4]
        $region20: #{tpu_custom_call.1} parent=11 // pred_fallthru
          _
        // Predicated region
        $region21: #{tpu_custom_call.1} parent=11 // pred_check
          %p222 = pneg %p104
        $region22: #{tpu_custom_call.1} parent=11 // pred_check_branch
          %224 = sbr.rel (%p222) target = $region24
        $region23: #{tpu_custom_call.1} parent=11 // pred_region
          _
        $region24: #{tpu_custom_call.1} parent=11 // pred_fallthru
          _
        // Predicated region
        $region25: #{tpu_custom_call.1} parent=11 // pred_check
          %p225 = pneg %p125
        $region26: #{tpu_custom_call.1} parent=11 // pred_check_branch
          %227 = sbr.rel (%p225) target = $region28
        $region27: #{tpu_custom_call.1} parent=11 // pred_region
          _
        $region28: #{tpu_custom_call.1} parent=11 // pred_fallthru
          _
        // Predicated region
        $region29: #{tpu_custom_call.1} parent=11 // pred_check
          %p228 = pneg %p146
        $region30: #{tpu_custom_call.1} parent=11 // pred_check_branch
          %230 = sbr.rel (%p228) target = $region32
        $region31: #{tpu_custom_call.1} parent=11 // pred_region
          _
        $region32: #{tpu_custom_call.1} parent=11 // pred_fallthru
          _
        // Predicated region
        $region33: #{tpu_custom_call.1} parent=11 // pred_check
          %p231 = pneg %p167
        $region34: #{tpu_custom_call.1} parent=11 // pred_check_branch
          %233 = sbr.rel (%p231) target = $region36
        $region35: #{tpu_custom_call.1} parent=11 // pred_region
          _
        $region36: #{tpu_custom_call.1} parent=11 // pred_fallthru
          _
      $region12: #{tpu_custom_call.1} parent=5 // pred_fallthru
        _
      %p234 = scmp.lt.s32.totalorder %s15, 2
      // Predicated region
      $region37: #{tpu_custom_call.1} parent=5 // pred_check
        %p235 = pneg %p234
      $region38: #{tpu_custom_call.1} parent=5 // pred_check_branch
        %237 = sbr.rel (%p235) target = $region40
      $region39: #{tpu_custom_call.1} parent=5 // pred_region
        // Predicated region
        $region41: #{tpu_custom_call.1} parent=39 // pred_check
          %p238 = pneg %p35
        $region42: #{tpu_custom_call.1} parent=39 // pred_check_branch
          %240 = sbr.rel (%p238) target = $region44
        $region43: #{tpu_custom_call.1} parent=39 // pred_region
          %s241 = smul.u32 16, %s15
          %p242 = scmp.lt.s32.totalorder %s241, 31
          %s243 = scalar_select %p242, %s241, 31
          %s244 = smul.addr %s243, 4
          %s245 = scalar_lea.vmem %s0, %s244
          %s246 = smul.u32 16, %s15
        $region44: #{tpu_custom_call.1} parent=39 // pred_fallthru
          _
      $region40: #{tpu_custom_call.1} parent=5 // pred_fallthru
        _
      %p247 = scmp.le.s32.totalorder 1, %s15
      %p248 = scmp.lt.s32.totalorder %s15, 3
      %p249 = pnand %p247, %p248
      %p250 = pneg %p249
      // Predicated region
      $region45: #{tpu_custom_call.1} parent=5 // pred_check
        _
      $region46: #{tpu_custom_call.1} parent=5 // pred_check_branch
        %252 = sbr.rel (%p249) target = $region48
      $region47: #{tpu_custom_call.1} parent=5 // pred_region
        %s253 = ssub.s32 %s15, 1
        // Predicated region
        $region49: #{tpu_custom_call.1} parent=47 // pred_check
          %p254 = pneg %p83
        $region50: #{tpu_custom_call.1} parent=47 // pred_check_branch
          %256 = sbr.rel (%p254) target = $region52
        $region51: #{tpu_custom_call.1} parent=47 // pred_region
          %257 = dma.done [#allocation4], 16
        $region52: #{tpu_custom_call.1} parent=47 // pred_fallthru
          _
        %s258 = smul.u32 16, %s20
        %p259 = scmp.lt.s32.totalorder %s258, 31
        %s260 = scalar_select %p259, %s258, 31
        %s261 = smul.addr %s260, 4
        %s262 = scalar_lea.vmem %s0, %s261
        %p263 = pneg %p41
        %p264 = pneg %p38
        %p265 = pneg %p62
        %p266 = pneg %p59
        %p267 = pneg %p83
        %p268 = pneg %p80
        %p269 = pneg %p104
        %p270 = pneg %p101
        %p271 = pneg %p125
        %p272 = pneg %p122
        %p273 = pneg %p146
        %p274 = pneg %p143
        %p275 = pneg %p167
        %p276 = pneg %p164
        %p277 = pneg %p193
        %p278 = pneg %p190
        %s279 = smul.u32 16, %s20
        %p280 = scmp.lt.s32.totalorder %s279, 31
        %s281 = scalar_select %p280, %s279, 31
        %s282 = smul.addr %s281, 8
        %s283 = scalar_lea.vmem %s7, %s282
        %s284 = smul.u32 16, %s20
        %p285 = scmp.lt.s32.totalorder %s284, 31
        %s286 = scalar_select %p285, %s284, 31
        %s287 = smul.addr %s286, 4
        %s288 = scalar_lea.vmem %s0, %s287
        %s289 = smul.u32 16, %s20
        %s290 = smul.u32 16, %s20
        %p291 = scmp.lt.s32.totalorder %s290, 31
        %s292 = scalar_select %p291, %s290, 31
        %s293 = smul.addr %s292, 8
        %s294 = scalar_lea.vmem %s7, %s293
        %s295 = smul.u32 16, %s20
        %v297 = vld [vmem:[%s288] sm:$0xf]
        %v298 = vld [vmem:[%s288 + $0x4] sm:$0xf]
        %v299 = vld [vmem:[%s288 + $0x8] sm:$0xf]
        %v300 = vld [vmem:[%s288 + $0xc] sm:$0xf]
        %v301 = vld [vmem:[%s288 + $0x10] sm:$0xf]
        %v302 = vld [vmem:[%s288 + $0x14] sm:$0xf]
        %v303 = vld [vmem:[%s288 + $0x18] sm:$0xf]
        %v304 = vld [vmem:[%s288 + $0x1c] sm:$0xf]
        %v305 = vld [vmem:[%s288 + $0x20] sm:$0xf]
        %v306 = vld [vmem:[%s288 + $0x24] sm:$0xf]
        %v307 = vld [vmem:[%s288 + $0x28] sm:$0xf]
        %v308 = vld [vmem:[%s288 + $0x2c] sm:$0xf]
        %v309 = vld [vmem:[%s288 + $0x30] sm:$0xf]
        %v310 = vld [vmem:[%s288 + $0x34] sm:$0xf]
        %v311 = vld [vmem:[%s288 + $0x38] sm:$0xf]
        %v312 = vld [vmem:[%s288 + $0x3c] sm:$0xf]
        %v313 = vld [vmem:[%s1] sm:$0xf]
        %v314 = vld [vmem:[%s1 + $0x4] sm:$0xf]
        %v315 = vld [vmem:[%s1 + $0x8] sm:$0xf]
        %v316 = vld [vmem:[%s1 + $0xc] sm:$0xf]
        %v317 = vld [vmem:[%s1 + $0x10] sm:$0xf]
        %v318 = vld [vmem:[%s1 + $0x14] sm:$0xf]
        %v319 = vld [vmem:[%s1 + $0x18] sm:$0xf]
        %v320 = vld [vmem:[%s1 + $0x1c] sm:$0xf]
        %v321 = vld [vmem:[%s1 + $0x20] sm:$0xf]
        %v322 = vld [vmem:[%s1 + $0x24] sm:$0xf]
        %v323 = vld [vmem:[%s1 + $0x28] sm:$0xf]
        %v324 = vld [vmem:[%s1 + $0x2c] sm:$0xf]
        %v325 = vld [vmem:[%s1 + $0x30] sm:$0xf]
        %v326 = vld [vmem:[%s1 + $0x34] sm:$0xf]
        %v327 = vld [vmem:[%s1 + $0x38] sm:$0xf]
        %v328 = vld [vmem:[%s1 + $0x3c] sm:$0xf]
        %v329 = vld [vmem:[#allocation3] sm:$0x1]
        %v331 = vlaneseq
        %v332 = vshrl.u32 %v331, 7
        %v333 = vsub.s32 0, %v332
        %v334 = vrot.slane %v329, %v333
        %v352 = vunpack.c.l.b16 %v297
        %v353 = vunpack.c.l.b16 %v298
        %v354 = vunpack.c.l.b16 %v299
        %v355 = vunpack.c.l.b16 %v300
        %v356 = vunpack.c.l.b16 %v301
        %v357 = vunpack.c.l.b16 %v302
        %v358 = vunpack.c.l.b16 %v303
        %v359 = vunpack.c.l.b16 %v304
        %v360 = vunpack.c.l.b16 %v305
        %v361 = vunpack.c.l.b16 %v306
        %v362 = vunpack.c.l.b16 %v307
        %v363 = vunpack.c.l.b16 %v308
        %v364 = vunpack.c.l.b16 %v309
        %v365 = vunpack.c.l.b16 %v310
        %v366 = vunpack.c.l.b16 %v311
        %v367 = vunpack.c.l.b16 %v312
        %v368 = vpack.c.b16 %v353, %v352
        %v369 = vpack.c.b16 %v355, %v354
        %v370 = vpack.c.b16 %v357, %v356
        %v371 = vpack.c.b16 %v359, %v358
        %v372 = vpack.c.b16 %v361, %v360
        %v373 = vpack.c.b16 %v363, %v362
        %v374 = vpack.c.b16 %v365, %v364
        %v375 = vpack.c.b16 %v367, %v366
        %v400 = vunpack.c.l.b16 %v313
        %v401 = vunpack.c.l.b16 %v314
        %v402 = vunpack.c.l.b16 %v315
        %v403 = vunpack.c.l.b16 %v316
        %v404 = vunpack.c.l.b16 %v317
        %v405 = vunpack.c.l.b16 %v318
        %v406 = vunpack.c.l.b16 %v319
        %v407 = vunpack.c.l.b16 %v320
        %v408 = vunpack.c.l.b16 %v321
        %v409 = vunpack.c.l.b16 %v322
        %v410 = vunpack.c.l.b16 %v323
        %v411 = vunpack.c.l.b16 %v324
        %v412 = vunpack.c.l.b16 %v325
        %v413 = vunpack.c.l.b16 %v326
        %v414 = vunpack.c.l.b16 %v327
        %v415 = vunpack.c.l.b16 %v328
        %v416 = vpack.c.b16 %v401, %v400
        %v417 = vpack.c.b16 %v403, %v402
        %v418 = vpack.c.b16 %v405, %v404
        %v419 = vpack.c.b16 %v407, %v406
        %v420 = vpack.c.b16 %v409, %v408
        %v421 = vpack.c.b16 %v411, %v410
        %v422 = vpack.c.b16 %v413, %v412
        %v423 = vpack.c.b16 %v415, %v414
        %432 = vmatprep.subr.bf16.mxu0 0
        %433 = vmatpush1.bf16.msra.mxu0 %v416
        %434 = vmatprep.subr.bf16.mxu0 0
        %435 = vmatpush1.bf16.msra.mxu0 %v417
        %436 = vmatprep.subr.bf16.mxu0 0
        %437 = vmatpush1.bf16.msra.mxu0 %v418
        %438 = vmatprep.subr.bf16.mxu0 0
        %439 = vmatpush1.bf16.msra.mxu0 %v419
        %440 = vmatprep.subr.bf16.mxu0 0
        %441 = vmatpush1.bf16.msra.mxu0 %v420
        %442 = vmatprep.subr.bf16.mxu0 0
        %443 = vmatpush1.bf16.msra.mxu0 %v421
        %444 = vmatprep.subr.bf16.mxu0 0
        %445 = vmatpush1.bf16.msra.mxu0 %v422
        %446 = vmatprep.subr.bf16.mxu0 0
        %447 = vmatpush1.bf16.msra.mxu0 %v423
        %448 = vmatprep.subr.bf16.mxu0 0
        %449 = vmatpush1.bf16.msra.mxu0 0
        %450 = vmatprep.subr.bf16.mxu0 0
        %451 = vmatpush1.bf16.msra.mxu0 0
        %452 = vmatprep.subr.bf16.mxu0 0
        %453 = vmatpush1.bf16.msra.mxu0 0
        %454 = vmatprep.subr.bf16.mxu0 0
        %455 = vmatpush1.bf16.msra.mxu0 0
        %456 = vmatprep.subr.bf16.mxu0 0
        %457 = vmatpush1.bf16.msra.mxu0 0
        %458 = vmatprep.subr.bf16.mxu0 0
        %459 = vmatpush1.bf16.msra.mxu0 0
        %460 = vmatprep.subr.bf16.mxu0 0
        %461 = vmatpush1.bf16.msra.mxu0 0
        %462 = vmatprep.subr.bf16.mxu0 0
        %463 = vmatpush1.bf16.msra.mxu0 0
        %464 = vmatprep.mubr.bf16.mxu0 0
        %465 = vmatmul.mubr.bf16.gmra.mrb[0].mxu0 %v368
        %v466 = vpop.f32.mrb[0].mxu0
        %v467 = vadd.f32 %v334, %v466
        %v468 = vpop.f32.mrb[0].mxu0
        %v469 = vpop.f32.mrb[0].mxu0
        %v470 = vadd.f32 %v334, %v469
        %v471 = vpop.f32.mrb[0].mxu0
        %472 = vmatprep.mubr.bf16.mxu0 0
        %473 = vmatmul.mubr.bf16.gmra.mrb[0].mxu0 %v369
        %v474 = vpop.f32.mrb[0].mxu0
        %v475 = vadd.f32 %v334, %v474
        %v476 = vpop.f32.mrb[0].mxu0
        %v477 = vpop.f32.mrb[0].mxu0
        %v478 = vadd.f32 %v334, %v477
        %v479 = vpop.f32.mrb[0].mxu0
        %480 = vmatprep.mubr.bf16.mxu0 0
        %481 = vmatmul.mubr.bf16.gmra.mrb[0].mxu0 %v370
        %v482 = vpop.f32.mrb[0].mxu0
        %v483 = vadd.f32 %v334, %v482
        %v484 = vpop.f32.mrb[0].mxu0
        %v485 = vpop.f32.mrb[0].mxu0
        %v486 = vadd.f32 %v334, %v485
        %v487 = vpop.f32.mrb[0].mxu0
        %488 = vmatprep.mubr.bf16.mxu0 0
        %489 = vmatmul.mubr.bf16.gmra.mrb[0].mxu0 %v371
        %v490 = vpop.f32.mrb[0].mxu0
        %v491 = vadd.f32 %v334, %v490
        %v492 = vpop.f32.mrb[0].mxu0
        %v493 = vpop.f32.mrb[0].mxu0
        %v494 = vadd.f32 %v334, %v493
        %v495 = vpop.f32.mrb[0].mxu0
        %496 = vmatprep.mubr.bf16.mxu0 0
        %497 = vmatmul.mubr.bf16.gmra.mrb[0].mxu0 %v372
        %v498 = vpop.f32.mrb[0].mxu0
        %v499 = vadd.f32 %v334, %v498
        %v500 = vpop.f32.mrb[0].mxu0
        %v501 = vpop.f32.mrb[0].mxu0
        %v502 = vadd.f32 %v334, %v501
        %v503 = vpop.f32.mrb[0].mxu0
        %504 = vmatprep.mubr.bf16.mxu0 0
        %505 = vmatmul.mubr.bf16.gmra.mrb[0].mxu0 %v373
        %v506 = vpop.f32.mrb[0].mxu0
        %v507 = vadd.f32 %v334, %v506
        %v508 = vpop.f32.mrb[0].mxu0
        %v509 = vpop.f32.mrb[0].mxu0
        %v510 = vadd.f32 %v334, %v509
        %v511 = vpop.f32.mrb[0].mxu0
        %512 = vmatprep.mubr.bf16.mxu0 0
        %513 = vmatmul.mubr.bf16.gmra.mrb[0].mxu0 %v374
        %v514 = vpop.f32.mrb[0].mxu0
        %v515 = vadd.f32 %v334, %v514
        %v516 = vpop.f32.mrb[0].mxu0
        %v517 = vpop.f32.mrb[0].mxu0
        %v518 = vadd.f32 %v334, %v517
        %v519 = vpop.f32.mrb[0].mxu0
        %520 = vmatprep.mubr.bf16.mxu0 0
        %521 = vmatmul.mubr.bf16.gmra.mrb[0].mxu0 %v375
        %v522 = vpop.f32.mrb[0].mxu0
        %v523 = vadd.f32 %v334, %v522
        %v524 = vpop.f32.mrb[0].mxu0
        %v525 = vpop.f32.mrb[0].mxu0
        %v526 = vadd.f32 %v334, %v525
        %v527 = vpop.f32.mrb[0].mxu0
        %528 = vdwg.mxu0
        %v529 = vmax.f32 %v467, 0.0
        %v530 = vmax.f32 %v470, 0.0
        %v531 = vmax.f32 %v475, 0.0
        %v532 = vmax.f32 %v478, 0.0
        %v533 = vmax.f32 %v483, 0.0
        %v534 = vmax.f32 %v486, 0.0
        %v535 = vmax.f32 %v491, 0.0
        %v536 = vmax.f32 %v494, 0.0
        %v537 = vmax.f32 %v499, 0.0
        %v538 = vmax.f32 %v502, 0.0
        %v539 = vmax.f32 %v507, 0.0
        %v540 = vmax.f32 %v510, 0.0
        %v541 = vmax.f32 %v515, 0.0
        %v542 = vmax.f32 %v518, 0.0
        %v543 = vmax.f32 %v523, 0.0
        %v544 = vmax.f32 %v526, 0.0
        %v545 = vpack.c.bf16 %v530, %v529
        %v546 = vpack.c.bf16 %v532, %v531
        %v547 = vpack.c.bf16 %v534, %v533
        %v548 = vpack.c.bf16 %v536, %v535
        %v549 = vpack.c.bf16 %v538, %v537
        %v550 = vpack.c.bf16 %v540, %v539
        %v551 = vpack.c.bf16 %v542, %v541
        %v552 = vpack.c.bf16 %v544, %v543
        %v553 = vld [vmem:[%s3] sm:$0xf]
        %v554 = vld [vmem:[%s3 + $0x4] sm:$0xf]
        %v555 = vld [vmem:[%s3 + $0x8] sm:$0xf]
        %v556 = vld [vmem:[%s3 + $0xc] sm:$0xf]
        %v557 = vld [vmem:[%s3 + $0x10] sm:$0xf]
        %v558 = vld [vmem:[%s3 + $0x14] sm:$0xf]
        %v559 = vld [vmem:[%s3 + $0x18] sm:$0xf]
        %v560 = vld [vmem:[%s3 + $0x1c] sm:$0xf]
        %v561 = vld [vmem:[%s4] sm:$0x1]
        %v563 = vlaneseq
        %v564 = vshrl.u32 %v563, 7
        %v565 = vsub.s32 0, %v564
        %v566 = vrot.slane %v561, %v565
        %v576 = vunpack.c.l.b16 %v553
        %v577 = vunpack.c.l.b16 %v554
        %v578 = vunpack.c.l.b16 %v555
        %v579 = vunpack.c.l.b16 %v556
        %v580 = vunpack.c.l.b16 %v557
        %v581 = vunpack.c.l.b16 %v558
        %v582 = vunpack.c.l.b16 %v559
        %v583 = vunpack.c.l.b16 %v560
        %v584 = vpack.c.b16 %v577, %v576
        %v585 = vpack.c.b16 %v579, %v578
        %v586 = vpack.c.b16 %v581, %v580
        %v587 = vpack.c.b16 %v583, %v582
        %vm592 = vcmask 523264
        %v594 = vsel %vm592, %v545, 0
        %v597 = vsel %vm592, %v546, 0
        %v600 = vsel %vm592, %v547, 0
        %v603 = vsel %vm592, %v548, 0
        %v606 = vsel %vm592, %v549, 0
        %v609 = vsel %vm592, %v550, 0
        %v612 = vsel %vm592, %v551, 0
        %v615 = vsel %vm592, %v552, 0
        %617 = vmatprep.subr.bf16.mxu0 0
        %618 = vmatpush1.bf16.msra.mxu0 %v584
        %619 = vmatprep.subr.bf16.mxu0 0
        %620 = vmatpush1.bf16.msra.mxu0 %v585
        %621 = vmatprep.subr.bf16.mxu0 0
        %622 = vmatpush1.bf16.msra.mxu0 %v586
        %623 = vmatprep.subr.bf16.mxu0 0
        %624 = vmatpush1.bf16.msra.mxu0 %v587
        %625 = vmatprep.subr.bf16.mxu0 0
        %626 = vmatpush1.bf16.msra.mxu0 0
        %627 = vmatprep.subr.bf16.mxu0 0
        %628 = vmatpush1.bf16.msra.mxu0 0
        %629 = vmatprep.subr.bf16.mxu0 0
        %630 = vmatpush1.bf16.msra.mxu0 0
        %631 = vmatprep.subr.bf16.mxu0 0
        %632 = vmatpush1.bf16.msra.mxu0 0
        %633 = vmatprep.subr.bf16.mxu0 0
        %634 = vmatpush1.bf16.msra.mxu0 0
        %635 = vmatprep.subr.bf16.mxu0 0
        %636 = vmatpush1.bf16.msra.mxu0 0
        %637 = vmatprep.subr.bf16.mxu0 0
        %638 = vmatpush1.bf16.msra.mxu0 0
        %639 = vmatprep.subr.bf16.mxu0 0
        %640 = vmatpush1.bf16.msra.mxu0 0
        %641 = vmatprep.subr.bf16.mxu0 0
        %642 = vmatpush1.bf16.msra.mxu0 0
        %643 = vmatprep.subr.bf16.mxu0 0
        %644 = vmatpush1.bf16.msra.mxu0 0
        %645 = vmatprep.subr.bf16.mxu0 0
        %646 = vmatpush1.bf16.msra.mxu0 0
        %647 = vmatprep.subr.bf16.mxu0 0
        %648 = vmatpush1.bf16.msra.mxu0 0
        %649 = vmatprep.mubr.bf16.mxu0 0
        %650 = vmatmul.mubr.bf16.gmra.mrb[0].mxu0 %v594
        %v651 = vpop.f32.mrb[0].mxu0
        %v652 = vadd.f32 %v566, %v651
        %v653 = vpop.f32.mrb[0].mxu0
        %v654 = vpop.f32.mrb[0].mxu0
        %v655 = vadd.f32 %v566, %v654
        %v656 = vpop.f32.mrb[0].mxu0
        %657 = vmatprep.mubr.bf16.mxu0 0
        %658 = vmatmul.mubr.bf16.gmra.mrb[0].mxu0 %v597
        %v659 = vpop.f32.mrb[0].mxu0
        %v660 = vadd.f32 %v566, %v659
        %v661 = vpop.f32.mrb[0].mxu0
        %v662 = vpop.f32.mrb[0].mxu0
        %v663 = vadd.f32 %v566, %v662
        %v664 = vpop.f32.mrb[0].mxu0
        %665 = vmatprep.mubr.bf16.mxu0 0
        %666 = vmatmul.mubr.bf16.gmra.mrb[0].mxu0 %v600
        %v667 = vpop.f32.mrb[0].mxu0
        %v668 = vadd.f32 %v566, %v667
        %v669 = vpop.f32.mrb[0].mxu0
        %v670 = vpop.f32.mrb[0].mxu0
        %v671 = vadd.f32 %v566, %v670
        %v672 = vpop.f32.mrb[0].mxu0
        %673 = vmatprep.mubr.bf16.mxu0 0
        %674 = vmatmul.mubr.bf16.gmra.mrb[0].mxu0 %v603
        %v675 = vpop.f32.mrb[0].mxu0
        %v676 = vadd.f32 %v566, %v675
        %v677 = vpop.f32.mrb[0].mxu0
        %v678 = vpop.f32.mrb[0].mxu0
        %v679 = vadd.f32 %v566, %v678
        %v680 = vpop.f32.mrb[0].mxu0
        %681 = vmatprep.mubr.bf16.mxu0 0
        %682 = vmatmul.mubr.bf16.gmra.mrb[0].mxu0 %v606
        %v683 = vpop.f32.mrb[0].mxu0
        %v684 = vadd.f32 %v566, %v683
        %v685 = vpop.f32.mrb[0].mxu0
        %v686 = vpop.f32.mrb[0].mxu0
        %v687 = vadd.f32 %v566, %v686
        %v688 = vpop.f32.mrb[0].mxu0
        %689 = vmatprep.mubr.bf16.mxu0 0
        %690 = vmatmul.mubr.bf16.gmra.mrb[0].mxu0 %v609
        %v691 = vpop.f32.mrb[0].mxu0
        %v692 = vadd.f32 %v566, %v691
        %v693 = vpop.f32.mrb[0].mxu0
        %v694 = vpop.f32.mrb[0].mxu0
        %v695 = vadd.f32 %v566, %v694
        %v696 = vpop.f32.mrb[0].mxu0
        %697 = vmatprep.mubr.bf16.mxu0 0
        %698 = vmatmul.mubr.bf16.gmra.mrb[0].mxu0 %v612
        %v699 = vpop.f32.mrb[0].mxu0
        %v700 = vadd.f32 %v566, %v699
        %v701 = vpop.f32.mrb[0].mxu0
        %v702 = vpop.f32.mrb[0].mxu0
        %v703 = vadd.f32 %v566, %v702
        %v704 = vpop.f32.mrb[0].mxu0
        %705 = vmatprep.mubr.bf16.mxu0 0
        %706 = vmatmul.mubr.bf16.gmra.mrb[0].mxu0 %v615
        %v707 = vpop.f32.mrb[0].mxu0
        %v708 = vadd.f32 %v566, %v707
        %v709 = vpop.f32.mrb[0].mxu0
        %v710 = vpop.f32.mrb[0].mxu0
        %v711 = vadd.f32 %v566, %v710
        %v712 = vpop.f32.mrb[0].mxu0
        %713 = vdwg.mxu0
        %v714 = vmax.f32 %v652, 0.0
        %v715 = vmax.f32 %v655, 0.0
        %v716 = vmax.f32 %v660, 0.0
        %v717 = vmax.f32 %v663, 0.0
        %v718 = vmax.f32 %v668, 0.0
        %v719 = vmax.f32 %v671, 0.0
        %v720 = vmax.f32 %v676, 0.0
        %v721 = vmax.f32 %v679, 0.0
        %v722 = vmax.f32 %v684, 0.0
        %v723 = vmax.f32 %v687, 0.0
        %v724 = vmax.f32 %v692, 0.0
        %v725 = vmax.f32 %v695, 0.0
        %v726 = vmax.f32 %v700, 0.0
        %v727 = vmax.f32 %v703, 0.0
        %v728 = vmax.f32 %v708, 0.0
        %v729 = vmax.f32 %v711, 0.0
        %v730 = vpack.c.bf16 %v715, %v714
        %v731 = vpack.c.bf16 %v717, %v716
        %v732 = vpack.c.bf16 %v719, %v718
        %v733 = vpack.c.bf16 %v721, %v720
        %v734 = vpack.c.bf16 %v723, %v722
        %v735 = vpack.c.bf16 %v725, %v724
        %v736 = vpack.c.bf16 %v727, %v726
        %v737 = vpack.c.bf16 %v729, %v728
        %v738 = vld [vmem:[%s5] sm:$0xf]
        %v739 = vld [vmem:[%s5 + $0x4] sm:$0xf]
        %v740 = vld [vmem:[%s5 + $0x8] sm:$0xf]
        %v741 = vld [vmem:[%s5 + $0xc] sm:$0xf]
        %s742 = sld [smem:[#allocation2]]
        %v743 = vstv %s742
        %v748 = vunpack.c.l.b16 %v738
        %v749 = vunpack.c.l.b16 %v739
        %v750 = vunpack.c.l.b16 %v740
        %v751 = vunpack.c.l.b16 %v741
        %v752 = vpack.c.b16 %v749, %v748
        %v753 = vpack.c.b16 %v751, %v750
        %vm756 = vcmask 261120
        %v758 = vsel %vm756, %v730, 0
        %v761 = vsel %vm756, %v731, 0
        %v764 = vsel %vm756, %v732, 0
        %v767 = vsel %vm756, %v733, 0
        %v770 = vsel %vm756, %v734, 0
        %v773 = vsel %vm756, %v735, 0
        %v776 = vsel %vm756, %v736, 0
        %v779 = vsel %vm756, %v737, 0
        %781 = vmatprep.subr.bf16.mxu0 0
        %782 = vmatpush1.bf16.msra.mxu0 %v752
        %783 = vmatprep.subr.bf16.mxu0 0
        %784 = vmatpush1.bf16.msra.mxu0 %v753
        %785 = vmatprep.subr.bf16.mxu0 0
        %786 = vmatpush1.bf16.msra.mxu0 0
        %787 = vmatprep.subr.bf16.mxu0 0
        %788 = vmatpush1.bf16.msra.mxu0 0
        %789 = vmatprep.subr.bf16.mxu0 0
        %790 = vmatpush1.bf16.msra.mxu0 0
        %791 = vmatprep.subr.bf16.mxu0 0
        %792 = vmatpush1.bf16.msra.mxu0 0
        %793 = vmatprep.subr.bf16.mxu0 0
        %794 = vmatpush1.bf16.msra.mxu0 0
        %795 = vmatprep.subr.bf16.mxu0 0
        %796 = vmatpush1.bf16.msra.mxu0 0
        %797 = vmatprep.subr.bf16.mxu0 0
        %798 = vmatpush1.bf16.msra.mxu0 0
        %799 = vmatprep.subr.bf16.mxu0 0
        %800 = vmatpush1.bf16.msra.mxu0 0
        %801 = vmatprep.subr.bf16.mxu0 0
        %802 = vmatpush1.bf16.msra.mxu0 0
        %803 = vmatprep.subr.bf16.mxu0 0
        %804 = vmatpush1.bf16.msra.mxu0 0
        %805 = vmatprep.subr.bf16.mxu0 0
        %806 = vmatpush1.bf16.msra.mxu0 0
        %807 = vmatprep.subr.bf16.mxu0 0
        %808 = vmatpush1.bf16.msra.mxu0 0
        %809 = vmatprep.subr.bf16.mxu0 0
        %810 = vmatpush1.bf16.msra.mxu0 0
        %811 = vmatprep.subr.bf16.mxu0 0
        %812 = vmatpush1.bf16.msra.mxu0 0
        %813 = vmatprep.mubr.bf16.mxu0 0
        %814 = vmatmul.mubr.bf16.gmra.mrb[0].mxu0 %v758
        %v815 = vpop.f32.mrb[0].mxu0
        %v816 = vadd.f32 %v743, %v815
        %v817 = vpop.f32.mrb[0].mxu0
        %v818 = vpop.f32.mrb[0].mxu0
        %v819 = vadd.f32 %v743, %v818
        %v820 = vpop.f32.mrb[0].mxu0
        %821 = vmatprep.mubr.bf16.mxu0 0
        %822 = vmatmul.mubr.bf16.gmra.mrb[0].mxu0 %v761
        %v823 = vpop.f32.mrb[0].mxu0
        %v824 = vadd.f32 %v743, %v823
        %v825 = vpop.f32.mrb[0].mxu0
        %v826 = vpop.f32.mrb[0].mxu0
        %v827 = vadd.f32 %v743, %v826
        %v828 = vpop.f32.mrb[0].mxu0
        %829 = vmatprep.mubr.bf16.mxu0 0
        %830 = vmatmul.mubr.bf16.gmra.mrb[0].mxu0 %v764
        %v831 = vpop.f32.mrb[0].mxu0
        %v832 = vadd.f32 %v743, %v831
        %v833 = vpop.f32.mrb[0].mxu0
        %v834 = vpop.f32.mrb[0].mxu0
        %v835 = vadd.f32 %v743, %v834
        %v836 = vpop.f32.mrb[0].mxu0
        %837 = vmatprep.mubr.bf16.mxu0 0
        %838 = vmatmul.mubr.bf16.gmra.mrb[0].mxu0 %v767
        %v839 = vpop.f32.mrb[0].mxu0
        %v840 = vadd.f32 %v743, %v839
        %v841 = vpop.f32.mrb[0].mxu0
        %v842 = vpop.f32.mrb[0].mxu0
        %v843 = vadd.f32 %v743, %v842
        %v844 = vpop.f32.mrb[0].mxu0
        %845 = vmatprep.mubr.bf16.mxu0 0
        %846 = vmatmul.mubr.bf16.gmra.mrb[0].mxu0 %v770
        %v847 = vpop.f32.mrb[0].mxu0
        %v848 = vadd.f32 %v743, %v847
        %v849 = vpop.f32.mrb[0].mxu0
        %v850 = vpop.f32.mrb[0].mxu0
        %v851 = vadd.f32 %v743, %v850
        %v852 = vpop.f32.mrb[0].mxu0
        %853 = vmatprep.mubr.bf16.mxu0 0
        %854 = vmatmul.mubr.bf16.gmra.mrb[0].mxu0 %v773
        %v855 = vpop.f32.mrb[0].mxu0
        %v856 = vadd.f32 %v743, %v855
        %v857 = vpop.f32.mrb[0].mxu0
        %v858 = vpop.f32.mrb[0].mxu0
        %v859 = vadd.f32 %v743, %v858
        %v860 = vpop.f32.mrb[0].mxu0
        %861 = vmatprep.mubr.bf16.mxu0 0
        %862 = vmatmul.mubr.bf16.gmra.mrb[0].mxu0 %v776
        %v863 = vpop.f32.mrb[0].mxu0
        %v864 = vadd.f32 %v743, %v863
        %v865 = vpop.f32.mrb[0].mxu0
        %v866 = vpop.f32.mrb[0].mxu0
        %v867 = vadd.f32 %v743, %v866
        %v868 = vpop.f32.mrb[0].mxu0
        %869 = vmatprep.mubr.bf16.mxu0 0
        %870 = vmatmul.mubr.bf16.gmra.mrb[0].mxu0 %v779
        %v871 = vpop.f32.mrb[0].mxu0
        %v872 = vadd.f32 %v743, %v871
        %v873 = vpop.f32.mrb[0].mxu0
        %v874 = vpop.f32.mrb[0].mxu0
        %v875 = vadd.f32 %v743, %v874
        %v876 = vpop.f32.mrb[0].mxu0
        %877 = vdwg.mxu0
        %vm878 = vcmask 7168
        %879 = vst.msk [vmem:[%s294] sm:$0xff] %vm878, %v816
        %880 = vst.msk [vmem:[%s294 + $0x8] sm:$0xff] %vm878, %v819
        %881 = vst.msk [vmem:[%s294 + $0x10] sm:$0xff] %vm878, %v824
        %882 = vst.msk [vmem:[%s294 + $0x18] sm:$0xff] %vm878, %v827
        %883 = vst.msk [vmem:[%s294 + $0x20] sm:$0xff] %vm878, %v832
        %884 = vst.msk [vmem:[%s294 + $0x28] sm:$0xff] %vm878, %v835
        %885 = vst.msk [vmem:[%s294 + $0x30] sm:$0xff] %vm878, %v840
        %886 = vst.msk [vmem:[%s294 + $0x38] sm:$0xff] %vm878, %v843
        %887 = vst.msk [vmem:[%s294 + $0x40] sm:$0xff] %vm878, %v848
        %888 = vst.msk [vmem:[%s294 + $0x48] sm:$0xff] %vm878, %v851
        %889 = vst.msk [vmem:[%s294 + $0x50] sm:$0xff] %vm878, %v856
        %890 = vst.msk [vmem:[%s294 + $0x58] sm:$0xff] %vm878, %v859
        %891 = vst.msk [vmem:[%s294 + $0x60] sm:$0xff] %vm878, %v864
        %892 = vst.msk [vmem:[%s294 + $0x68] sm:$0xff] %vm878, %v867
        %893 = vst.msk [vmem:[%s294 + $0x70] sm:$0xff] %vm878, %v872
        %894 = vst.msk [vmem:[%s294 + $0x78] sm:$0xff] %vm878, %v875
        %s895 = smul.u32 16, %s20
        %p896 = scmp.lt.s32.totalorder %s895, 31
        %s897 = scalar_select %p896, %s895, 31
        %s898 = smul.addr %s897, 8
        %s899 = scalar_lea.vmem %s7, %s898
        // Predicated region
        $region53: #{tpu_custom_call.1} parent=47 // pred_check
          %p900 = pneg %p190
        $region54: #{tpu_custom_call.1} parent=47 // pred_check_branch
          %902 = sbr.rel (%p900) target = $region56
        $region55: #{tpu_custom_call.1} parent=47 // pred_region
          %s903 = smul.u32 16, %s20
        $region56: #{tpu_custom_call.1} parent=47 // pred_fallthru
          _
      $region48: #{tpu_custom_call.1} parent=5 // pred_fallthru
        _
      %p904 = scmp.le.s32.totalorder 2, %s15
      // Predicated region
      $region57: #{tpu_custom_call.1} parent=5 // pred_check
        %p905 = pneg %p904
      $region58: #{tpu_custom_call.1} parent=5 // pred_check_branch
        %907 = sbr.rel (%p905) target = $region60
      $region59: #{tpu_custom_call.1} parent=5 // pred_region
        %s908 = ssub.s32 %s15, 2
        // Predicated region
        $region61: #{tpu_custom_call.1} parent=59 // pred_check
          %p909 = pneg %p196
        $region62: #{tpu_custom_call.1} parent=59 // pred_check_branch
          %911 = sbr.rel (%p909) target = $region64
        $region63: #{tpu_custom_call.1} parent=59 // pred_region
          %s912 = smul.u32 16, %s21
          %p913 = scmp.lt.s32.totalorder %s912, 31
          %s914 = scalar_select %p913, %s912, 31
          %s915 = smul.addr %s914, 8
          %s916 = scalar_lea.vmem %s7, %s915
        $region64: #{tpu_custom_call.1} parent=59 // pred_fallthru
          _
      $region60: #{tpu_custom_call.1} parent=5 // pred_fallthru
        _
    $region6: #{tpu_custom_call.1} parent=1 // loop_footer
      %s19 = sadd.s32 1, %s15
    $region7: #{tpu_custom_call.1} parent=1 // loop_footer_branch
      %14 = sbr.rel target = $region3
    $region8: #{tpu_custom_call.1} parent=1 // loop_exit
      _
    %917 = vsyncpa [#allocation4], 1
    %s918 = scalar_lea.sflag [#allocation4], 1
    %919 = vsyncpa %s918, 1

</llo_original>
